<compile_context>
chip_gen: v7x
topology: tpu7x:2x2x1
jax: 0.10.0
libtpu: 0.0.40
codegen_flags: <defaults>
</compile_context>

<pallas_src>
import functools

import jax
import jax.numpy as jnp
from jax.experimental import pallas as pl
from jax.experimental.pallas import tpu as pltpu

LANES = 128             # TPU vreg lane width
MAX_TILE_ROWS = 2048    # 2048 rows x 128 lanes = 262144 pixels per grid step
VMEM_TARGET_BYTES = 12 << 20   # keep the double-buffered working set ~<=24 MiB


def _train_kernel(x_ref, gt_ref, w_ref, b_ref, out_ref, stats_ref, *,
                  num_valid, needs_mask):
    """Fused 1x1-conv backbone + sigmoid + per-tile dice / pixel-acc partials.

    x_ref:     [1, C, TR, 128]  VMEM  image pixels (native dtype, lane-dense)
    gt_ref:    [1, 1, TR, 128]  VMEM  skeleton ground truth (native dtype)
    w_ref:     [C]              SMEM  1x1 conv weights (f32 scalars)
    b_ref:     [1]              SMEM  bias
    out_ref:   [1, 1, TR, 128]  VMEM  sigmoid(logits), cast to out dtype
    stats_ref: [1, 1, 4, 128]   VMEM  per-(image, tile) per-lane partial sums
               (rows: intersection, sum(pred), sum(gt), correct-pixel count).
    """
    C = x_ref.shape[1]
    TR = x_ref.shape[2]
    L = x_ref.shape[3]

    # 1x1 conv (C -> 1) as C scalar*vector FMAs on the VPU -- no MXU needed.
    logits = w_ref[0] * x_ref[0, 0].astype(jnp.float32) + b_ref[0]
    for c in range(1, C):
        logits = logits + w_ref[c] * x_ref[0, c].astype(jnp.float32)
    pred = jax.nn.sigmoid(logits)                       # (TR, L) f32

    out_ref[0, 0] = pred.astype(out_ref.dtype)          # lane-dense store

    gt = gt_ref[0, 0].astype(jnp.float32)               # (TR, L)
    agree = (logits > 0.0) == (gt > 0.5)                # == (pred>0.5)==(gt>0.5)

    one = jnp.float32(1.0)
    zero = jnp.float32(0.0)
    if needs_mask:
        # Only compiled in when P % 128 != 0 or the tile doesn't divide rows.
        j = pl.program_id(1)
        row = jax.lax.broadcasted_iota(jnp.int32, (TR, L), 0)
        col = jax.lax.broadcasted_iota(jnp.int32, (TR, L), 1)
        flat = j * (TR * L) + row * L + col
        valid = flat < num_valid
        pm = jnp.where(valid, pred, zero)
        gm = jnp.where(valid, gt, zero)
        cm = jnp.where(valid & agree, one, zero)
    else:
        pm = pred
        gm = gt
        cm = jnp.where(agree, one, zero)

    # Row-wise writes (no concat, no read-modify-write accumulate).
    stats_ref[0, 0, 0:1, :] = jnp.sum(pm * gm, axis=0, keepdims=True)
    stats_ref[0, 0, 1:2, :] = jnp.sum(pm, axis=0, keepdims=True)
    stats_ref[0, 0, 2:3, :] = jnp.sum(gm, axis=0, keepdims=True)
    stats_ref[0, 0, 3:4, :] = jnp.sum(cm, axis=0, keepdims=True)


def _eval_kernel(x_ref, w_ref, b_ref, out_ref):
    """Backbone + sigmoid only (no gt DMA, no stats math)."""
    C = x_ref.shape[1]
    logits = w_ref[0] * x_ref[0, 0].astype(jnp.float32) + b_ref[0]
    for c in range(1, C):
        logits = logits + w_ref[c] * x_ref[0, c].astype(jnp.float32)
    out_ref[0, 0] = jax.nn.sigmoid(logits).astype(out_ref.dtype)


def _to_tiles(a, rows, P, P_pad):
    """[N, C, H, W] -> [N, C, rows, 128] without changing dtype (reshape only)."""
    N, C = a.shape[0], a.shape[1]
    a = a.reshape(N, C, P)
    if P_pad != P:
        # TODO(synk): the ragged-P case could avoid this extra pad pass with an
        # in-kernel tail mask; real image sizes have H*W % 128 == 0.
        a = jnp.pad(a, ((0, 0), (0, 0), (0, P_pad - P)))
    return a.reshape(N, C, rows, LANES)


def _tile_rows(rows, bytes_per_row):
    """Largest tile (rows) that keeps the double-buffered set inside VMEM."""
    tr = min(MAX_TILE_ROWS, rows)
    cap = max(8, VMEM_TARGET_BYTES // max(1, bytes_per_row))
    if cap < tr:
        tr = max(8, (cap // 8) * 8)
    if tr < rows:
        tr = max(8, (tr // 8) * 8)   # keep sublane-aligned when tiling
    return tr


def _vmem_limit(per_step_bytes):
    # Double-buffered working set + headroom; stays under v7x's 64 MiB physical
    # while raising v5e's 16 MiB default scoped limit.
    return int(min(56 << 20, max(32 << 20, 2 * per_step_bytes + (2 << 20))))


def fused_skeleton_head_train(img, gt_map, w, b, out_dtype=None):
    """Backbone + sigmoid + dice / pixel-accuracy statistics in one pass."""
    N, C, H, W = img.shape
    P = H * W
    rows = pl.cdiv(P, LANES)
    P_pad = rows * LANES
    out_dtype = img.dtype if out_dtype is None else out_dtype

    x = _to_tiles(img, rows, P, P_pad)        # native dtype, no upcast
    g = _to_tiles(gt_map, rows, P, P_pad)     # native dtype, no upcast

    x_b = jnp.dtype(img.dtype).itemsize
    g_b = jnp.dtype(gt_map.dtype).itemsize
    o_b = jnp.dtype(out_dtype).itemsize
    bytes_per_row = LANES * (C * x_b + g_b + o_b)
    tr = _tile_rows(rows, bytes_per_row)
    jt = pl.cdiv(rows, tr)
    grid = (N, jt)

    needs_mask = (P_pad != P) or (rows % tr != 0)
    kernel = functools.partial(_train_kernel, num_valid=P, needs_mask=needs_mask)
    per_step = tr * bytes_per_row + 4 * LANES * 4

    pred, stats = pl.pallas_call(
        kernel,
        out_shape=(
            jax.ShapeDtypeStruct((N, 1, rows, LANES), out_dtype),
            jax.ShapeDtypeStruct((N, jt, 4, LANES), jnp.float32),
        ),
        grid_spec=pltpu.PrefetchScalarGridSpec(
            num_scalar_prefetch=0,
            grid=grid,
            in_specs=[
                pl.BlockSpec((1, C, tr, LANES), lambda n, j: (n, 0, j, 0)),
                pl.BlockSpec((1, 1, tr, LANES), lambda n, j: (n, 0, j, 0)),
                pl.BlockSpec(memory_space=pltpu.MemorySpace.SMEM),  # w
                pl.BlockSpec(memory_space=pltpu.MemorySpace.SMEM),  # b
            ],
            out_specs=(
                pl.BlockSpec((1, 1, tr, LANES), lambda n, j: (n, 0, j, 0)),
                pl.BlockSpec((1, 1, 4, LANES), lambda n, j: (n, j, 0, 0)),
            ),
        ),
        compiler_params=pltpu.CompilerParams(
            dimension_semantics=("parallel", "parallel"),
            vmem_limit_bytes=_vmem_limit(per_step)),
    )(x, g, w, b)

    pred_flat = pred.reshape(N, 1, P_pad)
    if P_pad != P:
        pred_flat = pred_flat[:, :, :P]
    skeleton_map = pred_flat.reshape(N, 1, H, W)

    intersection = jnp.sum(stats[:, :, 0, :])
    sum_pred = jnp.sum(stats[:, :, 1, :])
    sum_gt = jnp.sum(stats[:, :, 2, :])
    # Per-lane partial counts are exact small integers in f32 (<= tr <= 2048);
    # sum them as int32 so the pixel-accuracy count stays exact for huge N*H*W.
    num_correct = jnp.sum(stats[:, :, 3, :].astype(jnp.int32))
    return skeleton_map, intersection, sum_pred, sum_gt, num_correct


def fused_skeleton_head_eval(img, w, b, out_dtype=None):
    """Backbone + sigmoid only (inference path: no gt DMA, no stats)."""
    N, C, H, W = img.shape
    P = H * W
    rows = pl.cdiv(P, LANES)
    P_pad = rows * LANES
    out_dtype = img.dtype if out_dtype is None else out_dtype

    x = _to_tiles(img, rows, P, P_pad)
    x_b = jnp.dtype(img.dtype).itemsize
    o_b = jnp.dtype(out_dtype).itemsize
    bytes_per_row = LANES * (C * x_b + o_b)
    tr = _tile_rows(rows, bytes_per_row)
    grid = (N, pl.cdiv(rows, tr))
    per_step = tr * bytes_per_row

    pred = pl.pallas_call(
        _eval_kernel,
        out_shape=jax.ShapeDtypeStruct((N, 1, rows, LANES), out_dtype),
        grid_spec=pltpu.PrefetchScalarGridSpec(
            num_scalar_prefetch=0,
            grid=grid,
            in_specs=[
                pl.BlockSpec((1, C, tr, LANES), lambda n, j: (n, 0, j, 0)),
                pl.BlockSpec(memory_space=pltpu.MemorySpace.SMEM),  # w
                pl.BlockSpec(memory_space=pltpu.MemorySpace.SMEM),  # b
            ],
            out_specs=pl.BlockSpec((1, 1, tr, LANES), lambda n, j: (n, 0, j, 0)),
        ),
        compiler_params=pltpu.CompilerParams(
            dimension_semantics=("parallel", "parallel"),
            vmem_limit_bytes=_vmem_limit(per_step)),
    )(x, w, b)

    pred_flat = pred.reshape(N, 1, P_pad)
    if P_pad != P:
        pred_flat = pred_flat[:, :, :P]
    return pred_flat.reshape(N, 1, H, W)


class PallasModel:
    """JAX/Pallas port of the PyTorch `Model` forward pass."""

    def __init__(self, in_channels, key):
        k1, k2 = jax.random.split(key)
        # Deterministic synthetic backbone parameters (1x1 conv, C -> 1).
        self.w = jax.random.normal(k1, (in_channels,), jnp.float32) * 0.1
        self.b = jax.random.normal(k2, (1,), jnp.float32) * 0.1

    def __call__(self, inputs, targets, mode, itr):
        img = inputs['img']                       # [N, C, H, W], native dtype
        N, C, H, W = img.shape

        if mode == 'train':
            gt = targets['skeleton_map']          # native dtype (f32/int8/bool)
            skeleton_map, inter, sum_p, sum_g, num_correct = \
                fused_skeleton_head_train(img, gt, self.w, self.b,
                                          out_dtype=img.dtype)
            smooth = 1e-06
            dice = (2.0 * inter + smooth) / (sum_p + sum_g + smooth)
            loss = {'BCE': 1.0 - dice}            # Dice loss (name mirrors ref)
            num_pixels = N * H * W                # cfg.train_batch_size * H * W
            acc = {'batch_pixels': num_correct.astype(jnp.float32) / num_pixels}
            outs = {'skeleton_map': skeleton_map}
            return loss, acc, outs

        # Eval: lighter kernel without gt input / stats output.
        skeleton_map = fused_skeleton_head_eval(img, self.w, self.b,
                                                out_dtype=img.dtype)
        return {'skeleton_map': skeleton_map}


if __name__ == "__main__":
    key = jax.random.PRNGKey(0)
    k_img, k_gt, k_param = jax.random.split(key, 3)

    N, C, H, W = 2, 4, 16, 16
    img = jax.random.normal(k_img, (N, C, H, W), jnp.float32)
    skeleton_gt = (jax.random.uniform(k_gt, (N, 1, H, W)) > 0.5).astype(jnp.float32)

    model = PallasModel(in_channels=C, key=k_param)

    inputs = {'img': img}
    targets = {'skeleton_map': skeleton_gt}

    # Train path.
    loss, acc, outs = model(inputs, targets, mode='train', itr=0)
    jax.block_until_ready(loss['BCE'])
    jax.block_until_ready(acc['batch_pixels'])
    jax.block_until_ready(outs['skeleton_map'])

    # Eval path (kernel variant without gt / stats).
    outs_eval = model(inputs, None, mode='test', itr=0)
    jax.block_until_ready(outs_eval['skeleton_map'])

    # Pure-JAX reference of the same synthetic backbone.
    logits_ref = jnp.einsum('nchw,c->nhw', img, model.w)[:, None] + model.b[0]
    pred_ref = jax.nn.sigmoid(logits_ref)                  # [N, 1, H, W]
    p = pred_ref.reshape(-1)
    g = skeleton_gt.reshape(-1)
    inter = jnp.sum(p * g)
    union = jnp.sum(p) + jnp.sum(g)
    loss_ref = 1.0 - (2.0 * inter + 1e-06) / (union + 1e-06)
    acc_ref = jnp.mean(((p > 0.5) == (g > 0.5)).astype(jnp.float32))

    assert jnp.allclose(outs['skeleton_map'], pred_ref, atol=1e-5)
    assert jnp.allclose(outs_eval['skeleton_map'], pred_ref, atol=1e-5)
    assert jnp.allclose(loss['BCE'], loss_ref, atol=1e-5), (loss['BCE'], loss_ref)
    assert jnp.allclose(acc['batch_pixels'], acc_ref, atol=1e-5)

    # Narrow-dtype path: bf16 image + int8 gt stream straight through (no
    # wrapper upcast); skeleton_map comes back as bf16.
    img_bf16 = img.astype(jnp.bfloat16)
    gt_i8 = skeleton_gt.astype(jnp.int8)
    loss_n, acc_n, outs_n = model({'img': img_bf16},
                                  {'skeleton_map': gt_i8}, mode='train', itr=0)
    jax.block_until_ready(outs_n['skeleton_map'])
    assert outs_n['skeleton_map'].dtype == jnp.bfloat16
    assert jnp.allclose(loss_n['BCE'], loss_ref, atol=2e-2)
    assert jnp.allclose(acc_n['batch_pixels'], acc_ref, atol=2e-2)

    print("KERNEL_OK")
</pallas_src>

<mosaic_0001>
module attributes {stable_mosaic.version = 11 : i64} {
  func.func @_train_kernel(%arg0: i32, %arg1: i32, %arg2: memref<1x4x2x128xf32, #tpu.memory_space<vmem>>, %arg3: memref<1x1x2x128xf32, #tpu.memory_space<vmem>>, %arg4: memref<4xf32, #tpu.memory_space<smem>>, %arg5: memref<1xf32, #tpu.memory_space<smem>>, %arg6: memref<1x1x2x128xf32, #tpu.memory_space<vmem>>, %arg7: memref<1x1x4x128xf32, #tpu.memory_space<vmem>>) attributes {dimension_semantics = [#tpu.dimension_semantics<parallel>, #tpu.dimension_semantics<parallel>], iteration_bounds = array<i64: 2, 1>, scalar_prefetch = 0 : i64, scratch_operands = 0 : i64, tpu.core_type = #tpu.core_type<tc>, window_params = [{transform_indices = @transform_0, window_bounds = array<i64: 1, 4, 2, 128>}, {transform_indices = @transform_1, window_bounds = array<i64: 1, 1, 2, 128>}, {transform_indices = @transform_2, window_bounds = array<i64: 4>}, {transform_indices = @transform_3, window_bounds = array<i64: 1>}, {transform_indices = @transform_4, window_bounds = array<i64: 1, 1, 2, 128>}, {transform_indices = @transform_5, window_bounds = array<i64: 1, 1, 4, 128>}]} {
    %c0 = arith.constant 0 : index
    %0 = memref.load %arg4[%c0] : memref<4xf32, #tpu.memory_space<smem>>
    %c0_0 = arith.constant 0 : index
    %c0_1 = arith.constant 0 : index
    %c0_2 = arith.constant 0 : index
    %c0_3 = arith.constant 0 : index
    %1 = vector.load %arg2[%c0_0, %c0_1, %c0_2, %c0_3] : memref<1x4x2x128xf32, #tpu.memory_space<vmem>>, vector<1x1x2x128xf32>
    %2 = vector.shape_cast %1 : vector<1x1x2x128xf32> to vector<2x128xf32>
    %3 = vector.broadcast %0 : f32 to vector<2x128xf32>
    %4 = arith.mulf %3, %2 : vector<2x128xf32>
    %c0_4 = arith.constant 0 : index
    %5 = memref.load %arg5[%c0_4] : memref<1xf32, #tpu.memory_space<smem>>
    %6 = vector.broadcast %5 : f32 to vector<2x128xf32>
    %7 = arith.addf %4, %6 : vector<2x128xf32>
    %c1 = arith.constant 1 : index
    %8 = memref.load %arg4[%c1] : memref<4xf32, #tpu.memory_space<smem>>
    %c0_5 = arith.constant 0 : index
    %c1_6 = arith.constant 1 : index
    %c0_7 = arith.constant 0 : index
    %c0_8 = arith.constant 0 : index
    %9 = vector.load %arg2[%c0_5, %c1_6, %c0_7, %c0_8] : memref<1x4x2x128xf32, #tpu.memory_space<vmem>>, vector<1x1x2x128xf32>
    %10 = vector.shape_cast %9 : vector<1x1x2x128xf32> to vector<2x128xf32>
    %11 = vector.broadcast %8 : f32 to vector<2x128xf32>
    %12 = arith.mulf %11, %10 : vector<2x128xf32>
    %13 = arith.addf %7, %12 : vector<2x128xf32>
    %c2 = arith.constant 2 : index
    %14 = memref.load %arg4[%c2] : memref<4xf32, #tpu.memory_space<smem>>
    %c0_9 = arith.constant 0 : index
    %c2_10 = arith.constant 2 : index
    %c0_11 = arith.constant 0 : index
    %c0_12 = arith.constant 0 : index
    %15 = vector.load %arg2[%c0_9, %c2_10, %c0_11, %c0_12] : memref<1x4x2x128xf32, #tpu.memory_space<vmem>>, vector<1x1x2x128xf32>
    %16 = vector.shape_cast %15 : vector<1x1x2x128xf32> to vector<2x128xf32>
    %17 = vector.broadcast %14 : f32 to vector<2x128xf32>
    %18 = arith.mulf %17, %16 : vector<2x128xf32>
    %19 = arith.addf %13, %18 : vector<2x128xf32>
    %c3 = arith.constant 3 : index
    %20 = memref.load %arg4[%c3] : memref<4xf32, #tpu.memory_space<smem>>
    %c0_13 = arith.constant 0 : index
    %c3_14 = arith.constant 3 : index
    %c0_15 = arith.constant 0 : index
    %c0_16 = arith.constant 0 : index
    %21 = vector.load %arg2[%c0_13, %c3_14, %c0_15, %c0_16] : memref<1x4x2x128xf32, #tpu.memory_space<vmem>>, vector<1x1x2x128xf32>
    %22 = vector.shape_cast %21 : vector<1x1x2x128xf32> to vector<2x128xf32>
    %23 = vector.broadcast %20 : f32 to vector<2x128xf32>
    %24 = arith.mulf %23, %22 : vector<2x128xf32>
    %25 = arith.addf %19, %24 : vector<2x128xf32>
    %26 = arith.negf %25 : vector<2x128xf32>
    %27 = math.exp %26 : vector<2x128xf32>
    %cst = arith.constant 1.000000e+00 : f32
    %28 = vector.broadcast %cst : f32 to vector<2x128xf32>
    %29 = arith.addf %28, %27 : vector<2x128xf32>
    %30 = arith.divf %28, %29 : vector<2x128xf32>
    %c0_17 = arith.constant 0 : index
    %c0_18 = arith.constant 0 : index
    %c0_19 = arith.constant 0 : index
    %c0_20 = arith.constant 0 : index
    %31 = vector.load %arg6[%c0_17, %c0_18, %c0_19, %c0_20] : memref<1x1x2x128xf32, #tpu.memory_space<vmem>>, vector<1x1x2x128xf32>
    %32 = vector.shape_cast %31 : vector<1x1x2x128xf32> to vector<2x128xf32>
    %33 = vector.shape_cast %30 : vector<2x128xf32> to vector<1x1x2x128xf32>
    tpu.vector_store %arg6[%c0_17, %c0_18, %c0_19, %c0_20], %33 {strides = array<i32>} : memref<1x1x2x128xf32, #tpu.memory_space<vmem>>, vector<1x1x2x128xf32>,
    %c0_21 = arith.constant 0 : index
    %c0_22 = arith.constant 0 : index
    %c0_23 = arith.constant 0 : index
    %c0_24 = arith.constant 0 : index
    %34 = vector.load %arg3[%c0_21, %c0_22, %c0_23, %c0_24] : memref<1x1x2x128xf32, #tpu.memory_space<vmem>>, vector<1x1x2x128xf32>
    %35 = vector.shape_cast %34 : vector<1x1x2x128xf32> to vector<2x128xf32>
    %cst_25 = arith.constant 0.000000e+00 : f32
    %36 = vector.broadcast %cst_25 : f32 to vector<2x128xf32>
    %37 = arith.cmpf ogt, %25, %36 : vector<2x128xf32>
    %cst_26 = arith.constant 5.000000e-01 : f32
    %38 = vector.broadcast %cst_26 : f32 to vector<2x128xf32>
    %39 = arith.cmpf ogt, %35, %38 : vector<2x128xf32>
    %40 = arith.xori %37, %39 : vector<2x128xi1>
    %cst_27 = arith.constant dense<true> : vector<2x128xi1>
    %41 = arith.xori %40, %cst_27 : vector<2x128xi1>
    %cst_28 = arith.constant 1.000000e+00 : f32
    %cst_29 = arith.constant 0.000000e+00 : f32
    %42 = vector.broadcast %cst_28 : f32 to vector<2x128xf32>
    %43 = vector.broadcast %cst_29 : f32 to vector<2x128xf32>
    %44 = arith.select %41, %42, %43 : vector<2x128xi1>, vector<2x128xf32>
    %45 = arith.mulf %30, %35 : vector<2x128xf32>
    %cst_30 = arith.constant dense<0.000000e+00> : vector<128xf32>
    %46 = vector.multi_reduction <add>, %45, %cst_30 [0] : vector<2x128xf32> to vector<128xf32>
    %47 = vector.shape_cast %46 : vector<128xf32> to vector<1x128xf32>
    %c0_31 = arith.constant 0 : index
    %c0_32 = arith.constant 0 : index
    %c0_33 = arith.constant 0 : index
    %c0_34 = arith.constant 0 : index
    %48 = vector.load %arg7[%c0_31, %c0_32, %c0_33, %c0_34] : memref<1x1x4x128xf32, #tpu.memory_space<vmem>>, vector<1x1x1x128xf32>
    %49 = vector.shape_cast %48 : vector<1x1x1x128xf32> to vector<1x128xf32>
    %50 = vector.shape_cast %47 : vector<1x128xf32> to vector<1x1x1x128xf32>
    tpu.vector_store %arg7[%c0_31, %c0_32, %c0_33, %c0_34], %50 {strides = array<i32>} : memref<1x1x4x128xf32, #tpu.memory_space<vmem>>, vector<1x1x1x128xf32>,
    %cst_35 = arith.constant dense<0.000000e+00> : vector<128xf32>
    %51 = vector.multi_reduction <add>, %30, %cst_35 [0] : vector<2x128xf32> to vector<128xf32>
    %52 = vector.shape_cast %51 : vector<128xf32> to vector<1x128xf32>
    %c0_36 = arith.constant 0 : index
    %c0_37 = arith.constant 0 : index
    %c1_38 = arith.constant 1 : index
    %c0_39 = arith.constant 0 : index
    %53 = vector.load %arg7[%c0_36, %c0_37, %c1_38, %c0_39] : memref<1x1x4x128xf32, #tpu.memory_space<vmem>>, vector<1x1x1x128xf32>
    %54 = vector.shape_cast %53 : vector<1x1x1x128xf32> to vector<1x128xf32>
    %55 = vector.shape_cast %52 : vector<1x128xf32> to vector<1x1x1x128xf32>
    tpu.vector_store %arg7[%c0_36, %c0_37, %c1_38, %c0_39], %55 {strides = array<i32>} : memref<1x1x4x128xf32, #tpu.memory_space<vmem>>, vector<1x1x1x128xf32>,
    %cst_40 = arith.constant dense<0.000000e+00> : vector<128xf32>
    %56 = vector.multi_reduction <add>, %35, %cst_40 [0] : vector<2x128xf32> to vector<128xf32>
    %57 = vector.shape_cast %56 : vector<128xf32> to vector<1x128xf32>
    %c0_41 = arith.constant 0 : index
    %c0_42 = arith.constant 0 : index
    %c2_43 = arith.constant 2 : index
    %c0_44 = arith.constant 0 : index
    %58 = vector.load %arg7[%c0_41, %c0_42, %c2_43, %c0_44] : memref<1x1x4x128xf32, #tpu.memory_space<vmem>>, vector<1x1x1x128xf32>
    %59 = vector.shape_cast %58 : vector<1x1x1x128xf32> to vector<1x128xf32>
    %60 = vector.shape_cast %57 : vector<1x128xf32> to vector<1x1x1x128xf32>
    tpu.vector_store %arg7[%c0_41, %c0_42, %c2_43, %c0_44], %60 {strides = array<i32>} : memref<1x1x4x128xf32, #tpu.memory_space<vmem>>, vector<1x1x1x128xf32>,
    %cst_45 = arith.constant dense<0.000000e+00> : vector<128xf32>
    %61 = vector.multi_reduction <add>, %44, %cst_45 [0] : vector<2x128xf32> to vector<128xf32>
    %62 = vector.shape_cast %61 : vector<128xf32> to vector<1x128xf32>
    %c0_46 = arith.constant 0 : index
    %c0_47 = arith.constant 0 : index
    %c3_48 = arith.constant 3 : index
    %c0_49 = arith.constant 0 : index
    %63 = vector.load %arg7[%c0_46, %c0_47, %c3_48, %c0_49] : memref<1x1x4x128xf32, #tpu.memory_space<vmem>>, vector<1x1x1x128xf32>
    %64 = vector.shape_cast %63 : vector<1x1x1x128xf32> to vector<1x128xf32>
    %65 = vector.shape_cast %62 : vector<1x128xf32> to vector<1x1x1x128xf32>
    tpu.vector_store %arg7[%c0_46, %c0_47, %c3_48, %c0_49], %65 {strides = array<i32>} : memref<1x1x4x128xf32, #tpu.memory_space<vmem>>, vector<1x1x1x128xf32>,
    return
  }
  func.func @transform_0(%arg0: i32, %arg1: i32) -> (i32, i32, i32, i32) {
    %c0_i32 = arith.constant 0 : i32
    %c0_i32_0 = arith.constant 0 : i32
    %c0_i32_1 = arith.constant 0 : i32
    return %arg0, %c0_i32, %arg1, %c0_i32_0 : i32, i32, i32, i32
  }
  func.func @transform_1(%arg0: i32, %arg1: i32) -> (i32, i32, i32, i32) {
    %c0_i32 = arith.constant 0 : i32
    %c0_i32_0 = arith.constant 0 : i32
    %c0_i32_1 = arith.constant 0 : i32
    return %arg0, %c0_i32, %arg1, %c0_i32_0 : i32, i32, i32, i32
  }
  func.func @transform_2(%arg0: i32, %arg1: i32) -> i32 {
    %c0_i32 = arith.constant 0 : i32
    %c0_i32_0 = arith.constant 0 : i32
    return %c0_i32 : i32
  }
  func.func @transform_3(%arg0: i32, %arg1: i32) -> i32 {
    %c0_i32 = arith.constant 0 : i32
    %c0_i32_0 = arith.constant 0 : i32
    return %c0_i32 : i32
  }
  func.func @transform_4(%arg0: i32, %arg1: i32) -> (i32, i32, i32, i32) {
    %c0_i32 = arith.constant 0 : i32
    %c0_i32_0 = arith.constant 0 : i32
    %c0_i32_1 = arith.constant 0 : i32
    return %arg0, %c0_i32, %arg1, %c0_i32_0 : i32, i32, i32, i32
  }
  func.func @transform_5(%arg0: i32, %arg1: i32) -> (i32, i32, i32, i32) {
    %c0_i32 = arith.constant 0 : i32
    %c0_i32_0 = arith.constant 0 : i32
    %c0_i32_1 = arith.constant 0 : i32
    return %arg0, %arg1, %c0_i32, %c0_i32_0 : i32, i32, i32, i32
  }
}

</mosaic_0001>

<llo_original>
// kernel: tpu_custom_call.1
$region0: #{tpu_custom_call.1}
  #allocation0 [shape = 'u32[]', space=smem, size = 0x4, offset = 0x4, fixed_abs, tag = 'smem constant byte address 0x4 - core index']
  #allocation1 [shape = 'u32[144,128]{1,0:T(1,128)}', space=vmem, size = 0x12000, scoped, tag = 'internal scratch']
  #allocation2 [shape = 'f32[1]{0:T(128)S(6)}', space=smem, size = 0x200, scoped, tag = 'scoped memory for tpu_custom_call.1']
  %s0 = inlined_call_operand.hbm [shape: f32[2,4,2,128], index: 0, kind: input, shape index: {}]
  %s1 = inlined_call_operand.vmem [shape: f32[2,1,2,128], index: 1, kind: input, shape index: {}]
  %s2 = inlined_call_operand.vmem [shape: f32[4], index: 2, kind: input, shape index: {}]
  %s3 = inlined_call_operand.<no memory space> [shape: f32[1], index: 3, kind: input, shape index: {}]
  %s4 = inlined_call_operand.hbm [shape: f32[2,1,2,128], index: 4, kind: output, shape index: {0}]
  %s5 = inlined_call_operand.hbm [shape: f32[2,1,4,128], index: 5, kind: output, shape index: {1}]
  %6 = xla_tuple %s4, %s5
  %s7 = sld [smem:[#allocation0]]
  $region65: #{tpu_custom_call.1} parent=0
    _
  %s9 = ssub.s32 1, %s7
  %s10 = scalar_select 0, %s9, %s7
  %11 = sst [smem:[#allocation2]] %s3
  $region1: #{tpu_custom_call.1} parent=0
    #allocation3 [shape = 'u8[8192]{0}', space=vmem, size = 0x2000, scoped, tag = 'input window, operand 0']
    #allocation4 [shape = 's32[2]{0}', space=sflag, size = 0x8, scoped, tag = 'scoped memory for tpu_custom_call.1']
    #allocation5 [shape = 's32[2]{0}', space=sflag, size = 0x8, scoped, tag = 'scoped memory for tpu_custom_call.1']
    #allocation6 [shape = 's32[2]{0}', space=sflag, size = 0x8, scoped, tag = 'scoped memory for tpu_custom_call.1']
    #allocation7 [shape = 'u8[512]{0}', space=smem, size = 0x200, scoped, tag = 'input window, operand 2, single buffered']
    #allocation8 [shape = 'u8[2048]{0}', space=vmem, size = 0x800, scoped, tag = 'output window, operand 0']
    #allocation9 [shape = 'u8[4096]{0}', space=vmem, size = 0x1000, scoped, tag = 'output window, operand 1']
    #allocation10 [shape = 's32[2]{0}', space=sflag, size = 0x8, scoped, tag = 'scoped memory for tpu_custom_call.1']
    %12 = vsyncpa [#allocation4], 0
    %s13 = scalar_lea.sflag [#allocation4], 1
    %14 = vsyncpa %s13, 0
    %15 = vsyncpa [#allocation6], 0
    %16 = vsyncpa [#allocation5], 0
    %s17 = scalar_lea.sflag [#allocation5], 1
    %18 = vsyncpa %s17, 0
    %19 = vsyncpa [#allocation10], 0
    %s20 = scalar_lea.sflag [#allocation10], 1
    %21 = vsyncpa %s20, 0
    loop: start=0, step=1, limit=4
    $region2: #{tpu_custom_call.1} parent=1 // loop_pre_header
      _
    $region3: #{tpu_custom_call.1} parent=1 // loop_header
      %s23 = sphi 0, %s27
      %p24 = scmp.ge.s32.totalorder %s23, 4
      %s30 = sphi 0, %s42
      %s31 = sphi 0, %s38
      %s32 = sphi 0, %s30
      %s33 = sphi 0, %s31
      %s34 = sphi 0, %s32
      %s35 = sphi 0, %s33
      %s47 = sphi 0, %s49
      %s50 = sphi 0, %s47
      %s51 = sphi 0, %s50
      %s67 = sphi 0, %s51
      %s75 = sphi 0, %s77
      %s78 = sphi 0, %s75
      %s79 = sphi 0, %s78
      %s95 = sphi 0, %s79
      %s99 = sphi 0, %s99
      %s101 = sphi 0, %s99
      %s102 = sphi 0, %s101
      %s116 = sphi 0, %s102
      %s120 = sphi 0, %s120
      %s122 = sphi 0, %s120
      %s123 = sphi 0, %s122
      %s137 = sphi 0, %s123
      %s145 = sphi 0, %s147
      %s148 = sphi 0, %s145
      %s149 = sphi 0, %s148
      %s165 = sphi 0, %s149
      %s173 = sphi 0, %s175
      %s176 = sphi 0, %s173
      %s177 = sphi 0, %s176
      %s193 = sphi 0, %s177
    $region4: #{tpu_custom_call.1} parent=1 // loop_header_branch
      %26 = sbr.rel (%p24) target = $region8
    $region5: #{tpu_custom_call.1} parent=1 // loop_body
      %s28 = ssub.s32 %s23, 1
      %s29 = ssub.s32 %s23, 2
      %s36 = sadd.s32 1, %s31
      %p37 = scmp.ge.s32.totalorder %s36, 1
      %s38 = scalar_select %p37, 0, %s36
      %s39 = sadd.s32 1, %s30
      %s40 = scalar_select %p37, %s39, %s30
      %p41 = scmp.ge.s32.totalorder %s40, 2
      %s42 = scalar_select %p41, 0, %s40
      %s43 = ssub.s32 %s30, %s42
      %s44 = ssub.s32 %s31, %s38
      %s45 = sor.u32 %s43, %s44
      %p46 = scmp.eq.s32.totalorder %s45, 0
      %s48 = sadd.s32 %s47, 1
      %s49 = scalar_select %p46, %s47, %s48
      %p52 = pneg %p46
      %p53 = scmp.eq.s32.totalorder %s23, 1
      %p54 = por %p52, %p53
      %p55 = scmp.ne.s32.totalorder %s47, %s50
      %p56 = scmp.eq.s32.totalorder %s23, 0
      %p57 = por %p55, %p56
      %p58 = scmp.ne.s32.totalorder %s47, %s50
      %p59 = scmp.eq.s32.totalorder %s28, 1
      %p60 = por %p58, %p59
      %p61 = scmp.ne.s32.totalorder %s50, %s51
      %p62 = scmp.eq.s32.totalorder %s28, 0
      %p63 = por %p61, %p62
      %p64 = scmp.ne.s32.totalorder %s50, %s51
      %p65 = scmp.eq.s32.totalorder %s29, 1
      %p66 = por %p64, %p65
      %p68 = scmp.ne.s32.totalorder %s51, %s67
      %p69 = scmp.eq.s32.totalorder %s29, 0
      %p70 = por %p68, %p69
      %s71 = ssub.s32 %s30, %s42
      %s72 = ssub.s32 %s31, %s38
      %s73 = sor.u32 %s71, %s72
      %p74 = scmp.eq.s32.totalorder %s73, 0
      %s76 = sadd.s32 %s75, 1
      %s77 = scalar_select %p74, %s75, %s76
      %p80 = pneg %p74
      %p81 = scmp.eq.s32.totalorder %s23, 1
      %p82 = por %p80, %p81
      %p83 = scmp.ne.s32.totalorder %s75, %s78
      %p84 = scmp.eq.s32.totalorder %s23, 0
      %p85 = por %p83, %p84
      %p86 = scmp.ne.s32.totalorder %s75, %s78
      %p87 = scmp.eq.s32.totalorder %s28, 1
      %p88 = por %p86, %p87
      %p89 = scmp.ne.s32.totalorder %s78, %s79
      %p90 = scmp.eq.s32.totalorder %s28, 0
      %p91 = por %p89, %p90
      %p92 = scmp.ne.s32.totalorder %s78, %s79
      %p93 = scmp.eq.s32.totalorder %s29, 1
      %p94 = por %p92, %p93
      %p96 = scmp.ne.s32.totalorder %s79, %s95
      %p97 = scmp.eq.s32.totalorder %s29, 0
      %p98 = por %p96, %p97
      %s100 = sadd.s32 %s99, 1
      %p103 = scmp.eq.s32.totalorder %s23, 1
      %p104 = scmp.ne.s32.totalorder %s99, %s101
      %p105 = scmp.eq.s32.totalorder %s23, 0
      %p106 = por %p104, %p105
      %p107 = scmp.ne.s32.totalorder %s99, %s101
      %p108 = scmp.eq.s32.totalorder %s28, 1
      %p109 = por %p107, %p108
      %p110 = scmp.ne.s32.totalorder %s101, %s102
      %p111 = scmp.eq.s32.totalorder %s28, 0
      %p112 = por %p110, %p111
      %p113 = scmp.ne.s32.totalorder %s101, %s102
      %p114 = scmp.eq.s32.totalorder %s29, 1
      %p115 = por %p113, %p114
      %p117 = scmp.ne.s32.totalorder %s102, %s116
      %p118 = scmp.eq.s32.totalorder %s29, 0
      %p119 = por %p117, %p118
      %s121 = sadd.s32 %s120, 1
      %p124 = scmp.eq.s32.totalorder %s23, 1
      %p125 = scmp.ne.s32.totalorder %s120, %s122
      %p126 = scmp.eq.s32.totalorder %s23, 0
      %p127 = por %p125, %p126
      %p128 = scmp.ne.s32.totalorder %s120, %s122
      %p129 = scmp.eq.s32.totalorder %s28, 1
      %p130 = por %p128, %p129
      %p131 = scmp.ne.s32.totalorder %s122, %s123
      %p132 = scmp.eq.s32.totalorder %s28, 0
      %p133 = por %p131, %p132
      %p134 = scmp.ne.s32.totalorder %s122, %s123
      %p135 = scmp.eq.s32.totalorder %s29, 1
      %p136 = por %p134, %p135
      %p138 = scmp.ne.s32.totalorder %s123, %s137
      %p139 = scmp.eq.s32.totalorder %s29, 0
      %p140 = por %p138, %p139
      %s141 = ssub.s32 %s30, %s42
      %s142 = ssub.s32 %s31, %s38
      %s143 = sor.u32 %s141, %s142
      %p144 = scmp.eq.s32.totalorder %s143, 0
      %s146 = sadd.s32 %s145, 1
      %s147 = scalar_select %p144, %s145, %s146
      %p150 = pneg %p144
      %p151 = scmp.eq.s32.totalorder %s23, 1
      %p152 = por %p150, %p151
      %p153 = scmp.ne.s32.totalorder %s145, %s148
      %p154 = scmp.eq.s32.totalorder %s23, 0
      %p155 = por %p153, %p154
      %p156 = scmp.ne.s32.totalorder %s145, %s148
      %p157 = scmp.eq.s32.totalorder %s28, 1
      %p158 = por %p156, %p157
      %p159 = scmp.ne.s32.totalorder %s148, %s149
      %p160 = scmp.eq.s32.totalorder %s28, 0
      %p161 = por %p159, %p160
      %p162 = scmp.ne.s32.totalorder %s148, %s149
      %p163 = scmp.eq.s32.totalorder %s29, 1
      %p164 = por %p162, %p163
      %p166 = scmp.ne.s32.totalorder %s149, %s165
      %p167 = scmp.eq.s32.totalorder %s29, 0
      %p168 = por %p166, %p167
      %s169 = ssub.s32 %s30, %s42
      %s170 = ssub.s32 %s31, %s38
      %s171 = sor.u32 %s169, %s170
      %p172 = scmp.eq.s32.totalorder %s171, 0
      %s174 = sadd.s32 %s173, 1
      %s175 = scalar_select %p172, %s173, %s174
      %p178 = pneg %p172
      %p179 = scmp.eq.s32.totalorder %s23, 1
      %p180 = por %p178, %p179
      %p181 = scmp.ne.s32.totalorder %s173, %s176
      %p182 = scmp.eq.s32.totalorder %s23, 0
      %p183 = por %p181, %p182
      %p184 = scmp.ne.s32.totalorder %s173, %s176
      %p185 = scmp.eq.s32.totalorder %s28, 1
      %p186 = por %p184, %p185
      %p187 = scmp.ne.s32.totalorder %s176, %s177
      %p188 = scmp.eq.s32.totalorder %s28, 0
      %p189 = por %p187, %p188
      %p190 = scmp.ne.s32.totalorder %s176, %s177
      %p191 = scmp.eq.s32.totalorder %s29, 1
      %p192 = por %p190, %p191
      %p194 = scmp.ne.s32.totalorder %s177, %s193
      %p195 = scmp.eq.s32.totalorder %s29, 0
      %p196 = por %p194, %p195
      %p197 = scmp.le.s32.totalorder 1, %s23
      %p198 = scmp.lt.s32.totalorder %s23, 3
      %p199 = pnand %p197, %p198
      %p200 = pneg %p199
      // Predicated region
      $region9: #{tpu_custom_call.1} parent=5 // pred_check
        _
      $region10: #{tpu_custom_call.1} parent=5 // pred_check_branch
        %202 = sbr.rel (%p199) target = $region12
      $region11: #{tpu_custom_call.1} parent=5 // pred_region
        %s203 = ssub.s32 %s23, 1
        // Predicated region
        $region13: #{tpu_custom_call.1} parent=11 // pred_check
          %p204 = pneg %p112
        $region14: #{tpu_custom_call.1} parent=11 // pred_check_branch
          %206 = sbr.rel (%p204) target = $region16
        $region15: #{tpu_custom_call.1} parent=11 // pred_region
          %s208 = ssub.s32 16, 16
          %209 = vsyncadd [#allocation6], %s208
          %s211 = sshll.u32 %s2, 4
          %s212 = int_to_ptr.vmem [resolvable:$true] %s211
          %214 = dma.vmem_to_smem %s212, 16, [#allocation7], [#allocation6]
        $region16: #{tpu_custom_call.1} parent=11 // pred_fallthru
          _
        // Predicated region
        $region17: #{tpu_custom_call.1} parent=11 // pred_check
          %p215 = pneg %p133
        $region18: #{tpu_custom_call.1} parent=11 // pred_check_branch
          %217 = sbr.rel (%p215) target = $region20
        $region19: #{tpu_custom_call.1} parent=11 // pred_region
          _
        $region20: #{tpu_custom_call.1} parent=11 // pred_fallthru
          _
      $region12: #{tpu_custom_call.1} parent=5 // pred_fallthru
        _
      %p218 = scmp.lt.s32.totalorder %s23, 2
      // Predicated region
      $region21: #{tpu_custom_call.1} parent=5 // pred_check
        %p219 = pneg %p218
      $region22: #{tpu_custom_call.1} parent=5 // pred_check_branch
        %221 = sbr.rel (%p219) target = $region24
      $region23: #{tpu_custom_call.1} parent=5 // pred_region
        // Predicated region
        $region25: #{tpu_custom_call.1} parent=23 // pred_check
          %p222 = pneg %p57
        $region26: #{tpu_custom_call.1} parent=23 // pred_check_branch
          %224 = sbr.rel (%p222) target = $region28
        $region27: #{tpu_custom_call.1} parent=23 // pred_region
          %s225 = sand.u32 %s47, 1
          %s226 = scalar_lea.sflag [#allocation4], %s225
          %s227 = sand.u32 %s47, 1
          %s228 = smul.addr %s227, 8
          %s229 = scalar_lea.vmem [#allocation3], %s228
          %s231 = ssub.s32 128, 128
          %232 = vsyncadd %s226, %s231
          %s233 = smul.addr %s30, 4
          %s234 = sadd.s32 %s31, %s233
          %s235 = smul.addr %s234, 32
          %s236 = scalar_lea.hbm %s0, %s235
          %s237 = sshll.u32 %s229, 4
          %s238 = int_to_ptr.vmem [resolvable:$true] %s237
          %243 = dma.hbm_to_vmem [thread:$0]  %s236, 128, %s238, %s226, 32, 32, 2
        $region28: #{tpu_custom_call.1} parent=23 // pred_fallthru
          _
        // Predicated region
        $region29: #{tpu_custom_call.1} parent=23 // pred_check
          %p244 = pneg %p85
        $region30: #{tpu_custom_call.1} parent=23 // pred_check_branch
          %246 = sbr.rel (%p244) target = $region32
        $region31: #{tpu_custom_call.1} parent=23 // pred_region
          %p247 = scmp.lt.s32.totalorder %s30, 1
          %s248 = scalar_select %p247, %s30, 1
          %p249 = scmp.lt.s32.totalorder %s31, 0
          %s250 = scalar_select %p249, %s31, 0
          %s251 = sadd.s32 %s250, %s248
          %s252 = smul.addr %s251, 2
          %s253 = scalar_lea.vmem %s1, %s252
        $region32: #{tpu_custom_call.1} parent=23 // pred_fallthru
          _
      $region24: #{tpu_custom_call.1} parent=5 // pred_fallthru
        _
      %p254 = scmp.le.s32.totalorder 1, %s23
      %p255 = scmp.lt.s32.totalorder %s23, 3
      %p256 = pnand %p254, %p255
      %p257 = pneg %p256
      // Predicated region
      $region33: #{tpu_custom_call.1} parent=5 // pred_check
        _
      $region34: #{tpu_custom_call.1} parent=5 // pred_check_branch
        %259 = sbr.rel (%p256) target = $region36
      $region35: #{tpu_custom_call.1} parent=5 // pred_region
        %s260 = ssub.s32 %s23, 1
        %s261 = sand.u32 %s50, 1
        %s262 = scalar_lea.sflag [#allocation4], %s261
        %s263 = sand.u32 %s50, 1
        %s264 = smul.addr %s263, 8
        %s265 = scalar_lea.vmem [#allocation3], %s264
        // Predicated region
        $region37: #{tpu_custom_call.1} parent=35 // pred_check
          %p266 = pneg %p63
        $region38: #{tpu_custom_call.1} parent=35 // pred_check_branch
          %268 = sbr.rel (%p266) target = $region40
        $region39: #{tpu_custom_call.1} parent=35 // pred_region
          %269 = dma.done %s262, 128
        $region40: #{tpu_custom_call.1} parent=35 // pred_fallthru
          _
        // Predicated region
        $region41: #{tpu_custom_call.1} parent=35 // pred_check
          %p270 = pneg %p112
        $region42: #{tpu_custom_call.1} parent=35 // pred_check_branch
          %272 = sbr.rel (%p270) target = $region44
        $region43: #{tpu_custom_call.1} parent=35 // pred_region
          %273 = dma.done [#allocation6], 16
        $region44: #{tpu_custom_call.1} parent=35 // pred_fallthru
          _
        %274 = sfence
        %s275 = sand.u32 %s50, 1
        %s276 = scalar_lea.sflag [#allocation4], %s275
        %s277 = sand.u32 %s50, 1
        %s278 = smul.addr %s277, 8
        %s279 = scalar_lea.vmem [#allocation3], %s278
        %p280 = pneg %p63
        %p281 = pneg %p60
        %p282 = scmp.lt.s32.totalorder %s32, 1
        %s283 = scalar_select %p282, %s32, 1
        %p284 = scmp.lt.s32.totalorder %s33, 0
        %s285 = scalar_select %p284, %s33, 0
        %s286 = sadd.s32 %s285, %s283
        %s287 = smul.addr %s286, 2
        %s288 = scalar_lea.vmem %s1, %s287
        %p289 = pneg %p91
        %p290 = pneg %p88
        %p291 = pneg %p112
        %p292 = pneg %p109
        %p293 = pneg %p133
        %p294 = pneg %p130
        %p295 = pneg %p161
        %p296 = pneg %p158
        %s297 = sand.u32 %s148, 1
        %s298 = scalar_lea.sflag [#allocation5], %s297
        %s299 = sand.u32 %s148, 1
        %s300 = smul.addr %s299, 2
        %s301 = scalar_lea.vmem [#allocation8], %s300
        %p302 = pneg %p189
        %p303 = pneg %p186
        %s304 = sand.u32 %s176, 1
        %s305 = scalar_lea.sflag [#allocation10], %s304
        %s306 = sand.u32 %s176, 1
        %s307 = smul.addr %s306, 4
        %s308 = scalar_lea.vmem [#allocation9], %s307
        %p309 = scmp.lt.s32.totalorder %s32, 1
        %s310 = scalar_select %p309, %s32, 1
        %p311 = scmp.lt.s32.totalorder %s33, 0
        %s312 = scalar_select %p311, %s33, 0
        %s313 = sadd.s32 %s312, %s310
        %s314 = smul.addr %s313, 2
        %s315 = scalar_lea.vmem %s1, %s314
        %s316 = sld [smem:[#allocation7]]
        %v317 = vld [vmem:[%s265] sm:$0x3]
        %v318 = vstv %s316
        %v319 = vmul.f32 %v318, %v317
        %s320 = sld [smem:[#allocation2]]
        %v321 = vstv %s320
        %v322 = vadd.f32 %v319, %v321
        %s323 = sld [smem:[#allocation7 + $0x1]]
        %s324 = scalar_lea.vmem %s265, 2 [#allocation3]
        %v325 = vld [vmem:[%s324] sm:$0x3]
        %v326 = vstv %s323
        %v327 = vmul.f32 %v326, %v325
        %v328 = vadd.f32 %v322, %v327
        %s329 = sld [smem:[#allocation7 + $0x2]]
        %s330 = scalar_lea.vmem %s265, 4 [#allocation3]
        %v331 = vld [vmem:[%s330] sm:$0x3]
        %v332 = vstv %s329
        %v333 = vmul.f32 %v332, %v331
        %v334 = vadd.f32 %v328, %v333
        %s335 = sld [smem:[#allocation7 + $0x3]]
        %s336 = scalar_lea.vmem %s265, 6 [#allocation3]
        %v337 = vld [vmem:[%s336] sm:$0x3]
        %v338 = vstv %s335
        %v339 = vmul.f32 %v338, %v337
        %v340 = vadd.f32 %v334, %v339
        %v341 = vxor.u32 %v340, 2147483648
        %v342 = vmul.f32 %v341, 1.442695
        %v343 = vpow.pop %v342
        %v344 = vadd.f32 %v343, 1.0
        %v345 = vrcp.pop %v344
        %v346 = vmul.f32 1.0, %v345
        %347 = vst [vmem:[%s301] sm:$0x3] %v346
        %v348 = vld [vmem:[%s315] sm:$0x3]
        %vm349 = vcmp.gt.f32.partialorder %v340, 0.0
        %vm350 = vcmp.gt.f32.partialorder %v348, 0.5
        %vm351 = vmxor %vm349, %vm350
        %vm352 = vmxor %vm351, 1
        %v353 = vsel %vm352, 1.0, 0.0
        %v354 = vmul.f32 %v346, %v348
        %vm355 = vcmask 1041408
        %v356 = vsel %vm355, %v354, 0.0
        %v357 = vrot.slane %v356, 4
        %v358 = vadd.f32 %v356, %v357
        %v359 = vrot.slane %v358, 2
        %v360 = vadd.f32 %v358, %v359
        %v361 = vrot.slane %v360, 1
        %v362 = vadd.f32 %v360, %v361
        %363 = vst [vmem:[%s308] sm:$0x1] %v362
        %v364 = vsel %vm355, %v346, 0.0
        %v365 = vrot.slane %v364, 4
        %v366 = vadd.f32 %v364, %v365
        %v367 = vrot.slane %v366, 2
        %v368 = vadd.f32 %v366, %v367
        %v369 = vrot.slane %v368, 1
        %v370 = vadd.f32 %v368, %v369
        %371 = vst [vmem:[%s308 + $0x1] sm:$0x1] %v370
        %v372 = vsel %vm355, %v348, 0.0
        %v373 = vrot.slane %v372, 4
        %v374 = vadd.f32 %v372, %v373
        %v375 = vrot.slane %v374, 2
        %v376 = vadd.f32 %v374, %v375
        %v377 = vrot.slane %v376, 1
        %v378 = vadd.f32 %v376, %v377
        %379 = vst [vmem:[%s308 + $0x2] sm:$0x1] %v378
        %v380 = vsel %vm355, %v353, 0.0
        %v381 = vrot.slane %v380, 4
        %v382 = vadd.f32 %v380, %v381
        %v383 = vrot.slane %v382, 2
        %v384 = vadd.f32 %v382, %v383
        %v385 = vrot.slane %v384, 1
        %v386 = vadd.f32 %v384, %v385
        %387 = vst [vmem:[%s308 + $0x3] sm:$0x1] %v386
        %s388 = sand.u32 %s148, 1
        %s389 = scalar_lea.sflag [#allocation5], %s388
        %s390 = sand.u32 %s148, 1
        %s391 = smul.addr %s390, 2
        %s392 = scalar_lea.vmem [#allocation8], %s391
        %s393 = sand.u32 %s176, 1
        %s394 = scalar_lea.sflag [#allocation10], %s393
        %s395 = sand.u32 %s176, 1
        %s396 = smul.addr %s395, 4
        %s397 = scalar_lea.vmem [#allocation9], %s396
        // Predicated region
        $region45: #{tpu_custom_call.1} parent=35 // pred_check
          %p398 = pneg %p158
        $region46: #{tpu_custom_call.1} parent=35 // pred_check_branch
          %400 = sbr.rel (%p398) target = $region48
        $region47: #{tpu_custom_call.1} parent=35 // pred_region
          %s402 = ssub.s32 32, 32
          %403 = vsyncadd %s389, %s402
          %s404 = sadd.s32 %s33, %s32
          %s405 = smul.addr %s404, 32
          %s406 = scalar_lea.hbm %s4, %s405
          %s408 = sshll.u32 %s392, 4
          %s409 = int_to_ptr.vmem [resolvable:$true] %s408
          %411 = dma.vmem_to_hbm [thread:$0]  %s409, 32, %s406, %s389
        $region48: #{tpu_custom_call.1} parent=35 // pred_fallthru
          _
        // Predicated region
        $region49: #{tpu_custom_call.1} parent=35 // pred_check
          %p412 = pneg %p186
        $region50: #{tpu_custom_call.1} parent=35 // pred_check_branch
          %414 = sbr.rel (%p412) target = $region52
        $region51: #{tpu_custom_call.1} parent=35 // pred_region
          %s416 = ssub.s32 64, 64
          %417 = vsyncadd %s394, %s416
          %s418 = sadd.s32 %s33, %s32
          %s419 = smul.addr %s418, 64
          %s420 = scalar_lea.hbm %s5, %s419
          %s422 = sshll.u32 %s397, 4
          %s423 = int_to_ptr.vmem [resolvable:$true] %s422
          %425 = dma.vmem_to_hbm [thread:$0]  %s423, 64, %s420, %s394
        $region52: #{tpu_custom_call.1} parent=35 // pred_fallthru
          _
      $region36: #{tpu_custom_call.1} parent=5 // pred_fallthru
        _
      %p426 = scmp.le.s32.totalorder 2, %s23
      // Predicated region
      $region53: #{tpu_custom_call.1} parent=5 // pred_check
        %p427 = pneg %p426
      $region54: #{tpu_custom_call.1} parent=5 // pred_check_branch
        %429 = sbr.rel (%p427) target = $region56
      $region55: #{tpu_custom_call.1} parent=5 // pred_region
        %s430 = ssub.s32 %s23, 2
        // Predicated region
        $region57: #{tpu_custom_call.1} parent=55 // pred_check
          %p431 = pneg %p164
        $region58: #{tpu_custom_call.1} parent=55 // pred_check_branch
          %433 = sbr.rel (%p431) target = $region60
        $region59: #{tpu_custom_call.1} parent=55 // pred_region
          %s434 = sand.u32 %s149, 1
          %s435 = scalar_lea.sflag [#allocation5], %s434
          %s436 = sand.u32 %s149, 1
          %s437 = smul.addr %s436, 2
          %s438 = scalar_lea.vmem [#allocation8], %s437
          %439 = dma.done %s435, 32
        $region60: #{tpu_custom_call.1} parent=55 // pred_fallthru
          _
        // Predicated region
        $region61: #{tpu_custom_call.1} parent=55 // pred_check
          %p440 = pneg %p192
        $region62: #{tpu_custom_call.1} parent=55 // pred_check_branch
          %442 = sbr.rel (%p440) target = $region64
        $region63: #{tpu_custom_call.1} parent=55 // pred_region
          %s443 = sand.u32 %s177, 1
          %s444 = scalar_lea.sflag [#allocation10], %s443
          %s445 = sand.u32 %s177, 1
          %s446 = smul.addr %s445, 4
          %s447 = scalar_lea.vmem [#allocation9], %s446
          %448 = dma.done %s444, 64
        $region64: #{tpu_custom_call.1} parent=55 // pred_fallthru
          _
      $region56: #{tpu_custom_call.1} parent=5 // pred_fallthru
        _
    $region6: #{tpu_custom_call.1} parent=1 // loop_footer
      %s27 = sadd.s32 1, %s23
    $region7: #{tpu_custom_call.1} parent=1 // loop_footer_branch
      %22 = sbr.rel target = $region3
    $region8: #{tpu_custom_call.1} parent=1 // loop_exit
      _
    %449 = vsyncpa [#allocation4], 1
    %s450 = scalar_lea.sflag [#allocation4], 1
    %451 = vsyncpa %s450, 1
    %452 = vsyncpa [#allocation5], 1
    %s453 = scalar_lea.sflag [#allocation5], 1
    %454 = vsyncpa %s453, 1
    %455 = vsyncpa [#allocation10], 1
    %s456 = scalar_lea.sflag [#allocation10], 1
    %457 = vsyncpa %s456, 1
    %458 = vsyncpa [#allocation6], 1
    %s459 = scalar_lea.sflag [#allocation6], 1
    %460 = vsyncpa %s459, 1

</llo_original>
